<compile_context>
chip_gen: v7x
topology: tpu7x:2x2x1
jax: 0.10.0
libtpu: 0.0.40
codegen_flags: <defaults>
</compile_context>

<pallas_src>
import functools

import jax
import jax.numpy as jnp
from jax.experimental import pallas as pl
from jax.experimental.pallas import tpu as pltpu


def _round_up(x: int, m: int) -> int:
    return (x + m - 1) // m * m


def u_hjb_kernel(x_ref, p_ref, o_ref, *, dim):
    """One batch block.

    x_ref : (B_blk, dim)            input rows (batch on sublanes)
    p_ref : (2*dim + 1, W_pad)      parameter slab: rows [0,dim)=a,
                                    [dim,2*dim)=c+b, row 2*dim = w
    o_ref : (B_blk, 1)              per-row output u
    """
    x = x_ref[...].astype(jnp.float32)                        # (B, dim)
    a = p_ref[0:dim, :].astype(jnp.float32)                   # (dim, W)
    cb = p_ref[dim:2 * dim, :].astype(jnp.float32)            # (dim, W) = c + b
    w = p_ref[2 * dim:2 * dim + 1, :].astype(jnp.float32)     # (1, W)

    b_blk = x.shape[0]
    w_pad = a.shape[1]

    # ||a * (x - c - b)||^2, accumulated over the (small, static) dim axis.
    # Everything stays in (batch-sublane, width-lane) layout; padded width
    # columns have a == 0 so their contribution is exactly 0.
    s2 = jnp.zeros((b_blk, w_pad), jnp.float32)
    for d in range(dim):  # dim == 8: fully unrolled, pure VPU
        t = a[d:d + 1, :] * (x[:, d:d + 1] - cb[d:d + 1, :])  # (B, W)
        s2 = s2 + t * t

    e = jnp.exp(-0.5 * jnp.sqrt(s2))                          # (B, W) -> EUP
    # Padded columns: exp(0) = 1, but w == 0 there, so they add nothing.
    u = jnp.sum(e * w, axis=-1, keepdims=True)                # (B, 1) lane reduce
    o_ref[...] = u.astype(o_ref.dtype)


def u_hjb_forward(x, a, b, c, w, *, block_bs=128):
    """Pallas forward pass of U_HJB. x: (bs, dim) -> u: (bs,)."""
    bs, dim = x.shape
    width = w.shape[0]
    assert a.shape == (dim, width) and b.shape == (dim, width)
    assert c.shape == (dim,)

    # Lane-dense width: pad to a multiple of 128 with zero columns.
    w_pad = _round_up(width, 128)

    # Single parameter slab => one small grid-invariant DMA per step.
    slab = jnp.zeros((2 * dim + 1, w_pad), jnp.float32)
    slab = slab.at[0:dim, 0:width].set(a.astype(jnp.float32))
    slab = slab.at[dim:2 * dim, 0:width].set(
        c.astype(jnp.float32)[:, None] + b.astype(jnp.float32))
    slab = slab.at[2 * dim, 0:width].set(w.astype(jnp.float32))

    # Batch-block the grid (amortizes ~0.35us/step overhead); keep the block a
    # multiple of 8 for sublane alignment.  Tiles here are tiny (<< VMEM), so
    # no explicit vmem_limit_bytes is needed on any generation.
    b_blk = min(block_bs, _round_up(bs, 8))
    bs_pad = _round_up(bs, b_blk)
    nb = bs_pad // b_blk
    x_p = jnp.zeros((bs_pad, dim), x.dtype).at[0:bs, :].set(x)

    out = pl.pallas_call(
        functools.partial(u_hjb_kernel, dim=dim),
        out_shape=jax.ShapeDtypeStruct((bs_pad, 1), jnp.float32),
        grid_spec=pltpu.PrefetchScalarGridSpec(
            num_scalar_prefetch=0,
            grid=(nb,),
            in_specs=[
                pl.BlockSpec((b_blk, dim), lambda i: (i, 0)),          # x tile
                pl.BlockSpec((2 * dim + 1, w_pad), lambda i: (0, 0)),  # params
            ],
            out_specs=pl.BlockSpec((b_blk, 1), lambda i: (i, 0)),
        ),
        compiler_params=pltpu.CompilerParams(
            dimension_semantics=("parallel",)),  # batch steps are independent
    )(x_p, slab)

    return out[:bs, 0]


def u_hjb_reference(x, a, b, c, w):
    """Pure-JAX reference mirroring the PyTorch forward exactly."""
    t = a[None, :, :] * (x[:, :, None] - c[None, :, None] - b[None, :, :])
    nrm = jnp.sqrt(jnp.sum(t * t, axis=1))      # vector_norm over the dim axis
    return jnp.exp(-nrm / 2.0) @ w              # torch.mv(out, w)


if __name__ == "__main__":
    key = jax.random.PRNGKey(0)
    bs, dim, width = 32, 8, 50                  # module defaults: dim=8, width=50

    kx, ka, kb, kc, kw = jax.random.split(key, 5)
    x = jax.random.normal(kx, (bs, dim), jnp.float32)
    a = jax.random.normal(ka, (dim, width), jnp.float32)
    b = jax.random.normal(kb, (dim, width), jnp.float32)
    c = jax.random.normal(kc, (dim,), jnp.float32)
    w = jax.random.normal(kw, (width,), jnp.float32)

    out = jax.block_until_ready(u_hjb_forward(x, a, b, c, w))
    ref = u_hjb_reference(x, a, b, c, w)

    assert out.shape == (bs,)
    assert jnp.allclose(out, ref, atol=1e-4, rtol=1e-4), "mismatch vs reference"
    print("KERNEL_OK")
</pallas_src>

<mosaic_0001>
module attributes {stable_mosaic.version = 11 : i64} {
  func.func @u_hjb_kernel(%arg0: i32, %arg1: memref<32x8xf32, #tpu.memory_space<vmem>>, %arg2: memref<17x128xf32, #tpu.memory_space<vmem>>, %arg3: memref<32x1xf32, #tpu.memory_space<vmem>>) attributes {dimension_semantics = [#tpu.dimension_semantics<parallel>], iteration_bounds = array<i64: 1>, scalar_prefetch = 0 : i64, scratch_operands = 0 : i64, tpu.core_type = #tpu.core_type<tc>, window_params = [{transform_indices = @transform_0, window_bounds = array<i64: 32, 8>}, {pipeline_mode = #tpu.pipeline_mode<synchronous>, transform_indices = @transform_1, window_bounds = array<i64: 17, 128>}, {transform_indices = @transform_2, window_bounds = array<i64: 32, 1>}]} {
    %c0 = arith.constant 0 : index
    %c0_0 = arith.constant 0 : index
    %0 = vector.load %arg1[%c0, %c0_0] : memref<32x8xf32, #tpu.memory_space<vmem>>, vector<32x8xf32>
    %c0_1 = arith.constant 0 : index
    %c0_2 = arith.constant 0 : index
    %1 = vector.load %arg2[%c0_1, %c0_2] : memref<17x128xf32, #tpu.memory_space<vmem>>, vector<8x128xf32>
    %c8 = arith.constant 8 : index
    %c0_3 = arith.constant 0 : index
    %2 = vector.load %arg2[%c8, %c0_3] : memref<17x128xf32, #tpu.memory_space<vmem>>, vector<8x128xf32>
    %c16 = arith.constant 16 : index
    %c0_4 = arith.constant 0 : index
    %3 = vector.load %arg2[%c16, %c0_4] : memref<17x128xf32, #tpu.memory_space<vmem>>, vector<1x128xf32>
    %cst = arith.constant 0.000000e+00 : f32
    %4 = vector.broadcast %cst : f32 to vector<32x128xf32>
    %5 = vector.extract_strided_slice %1 {offsets = [0, 0], sizes = [1, 128], strides = [1, 1]} : vector<8x128xf32> to vector<1x128xf32>
    %6 = vector.extract_strided_slice %0 {offsets = [0, 0], sizes = [32, 1], strides = [1, 1]} : vector<32x8xf32> to vector<32x1xf32>
    %7 = vector.extract_strided_slice %2 {offsets = [0, 0], sizes = [1, 128], strides = [1, 1]} : vector<8x128xf32> to vector<1x128xf32>
    %8 = vector.broadcast %6 : vector<32x1xf32> to vector<32x128xf32>
    %9 = vector.broadcast %7 : vector<1x128xf32> to vector<32x128xf32>
    %10 = arith.subf %8, %9 : vector<32x128xf32>
    %11 = vector.broadcast %5 : vector<1x128xf32> to vector<32x128xf32>
    %12 = arith.mulf %11, %10 : vector<32x128xf32>
    %13 = arith.mulf %12, %12 : vector<32x128xf32>
    %14 = arith.addf %4, %13 : vector<32x128xf32>
    %15 = vector.extract_strided_slice %1 {offsets = [1, 0], sizes = [1, 128], strides = [1, 1]} : vector<8x128xf32> to vector<1x128xf32>
    %16 = vector.extract_strided_slice %0 {offsets = [0, 1], sizes = [32, 1], strides = [1, 1]} : vector<32x8xf32> to vector<32x1xf32>
    %17 = vector.extract_strided_slice %2 {offsets = [1, 0], sizes = [1, 128], strides = [1, 1]} : vector<8x128xf32> to vector<1x128xf32>
    %18 = vector.broadcast %16 : vector<32x1xf32> to vector<32x128xf32>
    %19 = vector.broadcast %17 : vector<1x128xf32> to vector<32x128xf32>
    %20 = arith.subf %18, %19 : vector<32x128xf32>
    %21 = vector.broadcast %15 : vector<1x128xf32> to vector<32x128xf32>
    %22 = arith.mulf %21, %20 : vector<32x128xf32>
    %23 = arith.mulf %22, %22 : vector<32x128xf32>
    %24 = arith.addf %14, %23 : vector<32x128xf32>
    %25 = vector.extract_strided_slice %1 {offsets = [2, 0], sizes = [1, 128], strides = [1, 1]} : vector<8x128xf32> to vector<1x128xf32>
    %26 = vector.extract_strided_slice %0 {offsets = [0, 2], sizes = [32, 1], strides = [1, 1]} : vector<32x8xf32> to vector<32x1xf32>
    %27 = vector.extract_strided_slice %2 {offsets = [2, 0], sizes = [1, 128], strides = [1, 1]} : vector<8x128xf32> to vector<1x128xf32>
    %28 = vector.broadcast %26 : vector<32x1xf32> to vector<32x128xf32>
    %29 = vector.broadcast %27 : vector<1x128xf32> to vector<32x128xf32>
    %30 = arith.subf %28, %29 : vector<32x128xf32>
    %31 = vector.broadcast %25 : vector<1x128xf32> to vector<32x128xf32>
    %32 = arith.mulf %31, %30 : vector<32x128xf32>
    %33 = arith.mulf %32, %32 : vector<32x128xf32>
    %34 = arith.addf %24, %33 : vector<32x128xf32>
    %35 = vector.extract_strided_slice %1 {offsets = [3, 0], sizes = [1, 128], strides = [1, 1]} : vector<8x128xf32> to vector<1x128xf32>
    %36 = vector.extract_strided_slice %0 {offsets = [0, 3], sizes = [32, 1], strides = [1, 1]} : vector<32x8xf32> to vector<32x1xf32>
    %37 = vector.extract_strided_slice %2 {offsets = [3, 0], sizes = [1, 128], strides = [1, 1]} : vector<8x128xf32> to vector<1x128xf32>
    %38 = vector.broadcast %36 : vector<32x1xf32> to vector<32x128xf32>
    %39 = vector.broadcast %37 : vector<1x128xf32> to vector<32x128xf32>
    %40 = arith.subf %38, %39 : vector<32x128xf32>
    %41 = vector.broadcast %35 : vector<1x128xf32> to vector<32x128xf32>
    %42 = arith.mulf %41, %40 : vector<32x128xf32>
    %43 = arith.mulf %42, %42 : vector<32x128xf32>
    %44 = arith.addf %34, %43 : vector<32x128xf32>
    %45 = vector.extract_strided_slice %1 {offsets = [4, 0], sizes = [1, 128], strides = [1, 1]} : vector<8x128xf32> to vector<1x128xf32>
    %46 = vector.extract_strided_slice %0 {offsets = [0, 4], sizes = [32, 1], strides = [1, 1]} : vector<32x8xf32> to vector<32x1xf32>
    %47 = vector.extract_strided_slice %2 {offsets = [4, 0], sizes = [1, 128], strides = [1, 1]} : vector<8x128xf32> to vector<1x128xf32>
    %48 = vector.broadcast %46 : vector<32x1xf32> to vector<32x128xf32>
    %49 = vector.broadcast %47 : vector<1x128xf32> to vector<32x128xf32>
    %50 = arith.subf %48, %49 : vector<32x128xf32>
    %51 = vector.broadcast %45 : vector<1x128xf32> to vector<32x128xf32>
    %52 = arith.mulf %51, %50 : vector<32x128xf32>
    %53 = arith.mulf %52, %52 : vector<32x128xf32>
    %54 = arith.addf %44, %53 : vector<32x128xf32>
    %55 = vector.extract_strided_slice %1 {offsets = [5, 0], sizes = [1, 128], strides = [1, 1]} : vector<8x128xf32> to vector<1x128xf32>
    %56 = vector.extract_strided_slice %0 {offsets = [0, 5], sizes = [32, 1], strides = [1, 1]} : vector<32x8xf32> to vector<32x1xf32>
    %57 = vector.extract_strided_slice %2 {offsets = [5, 0], sizes = [1, 128], strides = [1, 1]} : vector<8x128xf32> to vector<1x128xf32>
    %58 = vector.broadcast %56 : vector<32x1xf32> to vector<32x128xf32>
    %59 = vector.broadcast %57 : vector<1x128xf32> to vector<32x128xf32>
    %60 = arith.subf %58, %59 : vector<32x128xf32>
    %61 = vector.broadcast %55 : vector<1x128xf32> to vector<32x128xf32>
    %62 = arith.mulf %61, %60 : vector<32x128xf32>
    %63 = arith.mulf %62, %62 : vector<32x128xf32>
    %64 = arith.addf %54, %63 : vector<32x128xf32>
    %65 = vector.extract_strided_slice %1 {offsets = [6, 0], sizes = [1, 128], strides = [1, 1]} : vector<8x128xf32> to vector<1x128xf32>
    %66 = vector.extract_strided_slice %0 {offsets = [0, 6], sizes = [32, 1], strides = [1, 1]} : vector<32x8xf32> to vector<32x1xf32>
    %67 = vector.extract_strided_slice %2 {offsets = [6, 0], sizes = [1, 128], strides = [1, 1]} : vector<8x128xf32> to vector<1x128xf32>
    %68 = vector.broadcast %66 : vector<32x1xf32> to vector<32x128xf32>
    %69 = vector.broadcast %67 : vector<1x128xf32> to vector<32x128xf32>
    %70 = arith.subf %68, %69 : vector<32x128xf32>
    %71 = vector.broadcast %65 : vector<1x128xf32> to vector<32x128xf32>
    %72 = arith.mulf %71, %70 : vector<32x128xf32>
    %73 = arith.mulf %72, %72 : vector<32x128xf32>
    %74 = arith.addf %64, %73 : vector<32x128xf32>
    %75 = vector.extract_strided_slice %1 {offsets = [7, 0], sizes = [1, 128], strides = [1, 1]} : vector<8x128xf32> to vector<1x128xf32>
    %76 = vector.extract_strided_slice %0 {offsets = [0, 7], sizes = [32, 1], strides = [1, 1]} : vector<32x8xf32> to vector<32x1xf32>
    %77 = vector.extract_strided_slice %2 {offsets = [7, 0], sizes = [1, 128], strides = [1, 1]} : vector<8x128xf32> to vector<1x128xf32>
    %78 = vector.broadcast %76 : vector<32x1xf32> to vector<32x128xf32>
    %79 = vector.broadcast %77 : vector<1x128xf32> to vector<32x128xf32>
    %80 = arith.subf %78, %79 : vector<32x128xf32>
    %81 = vector.broadcast %75 : vector<1x128xf32> to vector<32x128xf32>
    %82 = arith.mulf %81, %80 : vector<32x128xf32>
    %83 = arith.mulf %82, %82 : vector<32x128xf32>
    %84 = arith.addf %74, %83 : vector<32x128xf32>
    %85 = math.sqrt %84 : vector<32x128xf32>
    %cst_5 = arith.constant -5.000000e-01 : f32
    %86 = vector.broadcast %cst_5 : f32 to vector<32x128xf32>
    %87 = arith.mulf %86, %85 : vector<32x128xf32>
    %88 = math.exp %87 : vector<32x128xf32>
    %89 = vector.broadcast %3 : vector<1x128xf32> to vector<32x128xf32>
    %90 = arith.mulf %88, %89 : vector<32x128xf32>
    %cst_6 = arith.constant dense<0.000000e+00> : vector<32xf32>
    %91 = vector.multi_reduction <add>, %90, %cst_6 [1] : vector<32x128xf32> to vector<32xf32>
    %92 = vector.shape_cast %91 : vector<32xf32> to vector<32x1xf32>
    %c0_7 = arith.constant 0 : index
    %c0_8 = arith.constant 0 : index
    %93 = vector.load %arg3[%c0_7, %c0_8] : memref<32x1xf32, #tpu.memory_space<vmem>>, vector<32x1xf32>
    tpu.vector_store %arg3[%c0_7, %c0_8], %92 {strides = array<i32>} : memref<32x1xf32, #tpu.memory_space<vmem>>, vector<32x1xf32>,
    return
  }
  func.func @transform_0(%arg0: i32) -> (i32, i32) {
    %c0_i32 = arith.constant 0 : i32
    %c0_i32_0 = arith.constant 0 : i32
    return %arg0, %c0_i32 : i32, i32
  }
  func.func @transform_1(%arg0: i32) -> (i32, i32) {
    %c0_i32 = arith.constant 0 : i32
    %c0_i32_0 = arith.constant 0 : i32
    %c0_i32_1 = arith.constant 0 : i32
    return %c0_i32, %c0_i32_0 : i32, i32
  }
  func.func @transform_2(%arg0: i32) -> (i32, i32) {
    %c0_i32 = arith.constant 0 : i32
    %c0_i32_0 = arith.constant 0 : i32
    return %arg0, %c0_i32 : i32, i32
  }
}

</mosaic_0001>

<llo_original>
// kernel: tpu_custom_call.1
$region0: #{tpu_custom_call.1}
  #allocation0 [shape = 'u32[]', space=smem, size = 0x4, offset = 0x4, fixed_abs, tag = 'smem constant byte address 0x4 - core index']
  #allocation1 [shape = 'u32[144,128]{1,0:T(1,128)}', space=vmem, size = 0x12000, scoped, tag = 'internal scratch']
  %s0 = inlined_call_operand.vmem [shape: f32[32,8], index: 0, kind: input, shape index: {}]
  %s1 = inlined_call_operand.vmem [shape: f32[17,128], index: 1, kind: input, shape index: {}]
  %s2 = inlined_call_operand.vmem [shape: f32[32,1], index: 2, kind: output, shape index: {}]
  %s3 = sld [smem:[#allocation0]]
  $region18: #{tpu_custom_call.1} parent=0
    _
  %s5 = ssub.s32 1, %s3
  %s6 = scalar_select 0, %s5, %s3
  // Predicated region
  $region2: #{tpu_custom_call.1} parent=0 // pred_check
    _
  $region3: #{tpu_custom_call.1} parent=0 // pred_check_branch
    %8 = sbr.rel (0) target = $region5
  $region4: #{tpu_custom_call.1} parent=0 // pred_region
    _
  $region5: #{tpu_custom_call.1} parent=0 // pred_fallthru
    _
  // Predicated region
  $region6: #{tpu_custom_call.1} parent=0 // pred_check
    _
  $region7: #{tpu_custom_call.1} parent=0 // pred_check_branch
    %10 = sbr.rel (0) target = $region9
  $region8: #{tpu_custom_call.1} parent=0 // pred_region
    _
  $region9: #{tpu_custom_call.1} parent=0 // pred_fallthru
    _
  %v11 = vld [vmem:[%s0] sm:$0xff]
  %v12 = vld [vmem:[%s0 + $0x8] sm:$0xff]
  %v13 = vld [vmem:[%s0 + $0x10] sm:$0xff]
  %v14 = vld [vmem:[%s0 + $0x18] sm:$0xff]
  %v15 = vld [vmem:[%s1] sm:$0xff]
  %v16 = vld [vmem:[%s1 + $0x8] sm:$0xff]
  %v17 = vld [vmem:[%s1 + $0x10] sm:$0x1]
  %19 = vset.pattern.permute.xlu0 0
  %20 = vperm.xlu0 %19, %v11
  %v21 = vpop.permute.xlu0 %20
  %24 = vset.pattern.permute.xlu0 0
  %25 = vperm.xlu0 %24, %v12
  %v26 = vpop.permute.xlu0 %25
  %29 = vset.pattern.permute.xlu0 0
  %30 = vperm.xlu0 %29, %v13
  %v31 = vpop.permute.xlu0 %30
  %34 = vset.pattern.permute.xlu0 0
  %35 = vperm.xlu0 %34, %v14
  %v36 = vpop.permute.xlu0 %35
  %v38 = vlaneseq
  %v39 = vshrl.u32 %v38, 7
  %v40 = vsub.s32 0, %v39
  %v41 = vrot.slane %v16, %v40
  %v42 = vsub.f32 %v21, %v41
  %v43 = vsub.f32 %v26, %v41
  %v44 = vsub.f32 %v31, %v41
  %v45 = vsub.f32 %v36, %v41
  %v46 = vlaneseq
  %v47 = vshrl.u32 %v46, 7
  %v48 = vsub.s32 0, %v47
  %v49 = vrot.slane %v15, %v48
  %v50 = vmul.f32 %v49, %v42
  %v51 = vmul.f32 %v49, %v43
  %v52 = vmul.f32 %v49, %v44
  %v53 = vmul.f32 %v49, %v45
  %v54 = vmul.f32 %v50, %v50
  %v55 = vmul.f32 %v51, %v51
  %v56 = vmul.f32 %v52, %v52
  %v57 = vmul.f32 %v53, %v53
  %v58 = vadd.f32 %v54, 0.0
  %v59 = vadd.f32 %v55, 0.0
  %v60 = vadd.f32 %v56, 0.0
  %v61 = vadd.f32 %v57, 0.0
  %62 = vset.pattern.permute.xlu0 1
  %63 = vperm.xlu0 %62, %v11
  %v64 = vpop.permute.xlu0 %63
  %66 = vset.pattern.permute.xlu0 1
  %67 = vperm.xlu0 %66, %v12
  %v68 = vpop.permute.xlu0 %67
  %70 = vset.pattern.permute.xlu0 1
  %71 = vperm.xlu0 %70, %v13
  %v72 = vpop.permute.xlu0 %71
  %74 = vset.pattern.permute.xlu0 1
  %75 = vperm.xlu0 %74, %v14
  %v76 = vpop.permute.xlu0 %75
  %v78 = vlaneseq
  %v79 = vshrl.u32 %v78, 7
  %v80 = vsub.s32 1, %v79
  %v81 = vrot.slane %v16, %v80
  %v82 = vsub.f32 %v64, %v81
  %v83 = vsub.f32 %v68, %v81
  %v84 = vsub.f32 %v72, %v81
  %v85 = vsub.f32 %v76, %v81
  %v86 = vlaneseq
  %v87 = vshrl.u32 %v86, 7
  %v88 = vsub.s32 1, %v87
  %v89 = vrot.slane %v15, %v88
  %v90 = vmul.f32 %v89, %v82
  %v91 = vmul.f32 %v89, %v83
  %v92 = vmul.f32 %v89, %v84
  %v93 = vmul.f32 %v89, %v85
  %v94 = vmul.f32 %v90, %v90
  %v95 = vmul.f32 %v91, %v91
  %v96 = vmul.f32 %v92, %v92
  %v97 = vmul.f32 %v93, %v93
  %v98 = vadd.f32 %v58, %v94
  %v99 = vadd.f32 %v59, %v95
  %v100 = vadd.f32 %v60, %v96
  %v101 = vadd.f32 %v61, %v97
  %102 = vset.pattern.permute.xlu0 2
  %103 = vperm.xlu0 %102, %v11
  %v104 = vpop.permute.xlu0 %103
  %106 = vset.pattern.permute.xlu0 2
  %107 = vperm.xlu0 %106, %v12
  %v108 = vpop.permute.xlu0 %107
  %110 = vset.pattern.permute.xlu0 2
  %111 = vperm.xlu0 %110, %v13
  %v112 = vpop.permute.xlu0 %111
  %114 = vset.pattern.permute.xlu0 2
  %115 = vperm.xlu0 %114, %v14
  %v116 = vpop.permute.xlu0 %115
  %v118 = vlaneseq
  %v119 = vshrl.u32 %v118, 7
  %v120 = vsub.s32 2, %v119
  %v121 = vrot.slane %v16, %v120
  %v122 = vsub.f32 %v104, %v121
  %v123 = vsub.f32 %v108, %v121
  %v124 = vsub.f32 %v112, %v121
  %v125 = vsub.f32 %v116, %v121
  %v126 = vlaneseq
  %v127 = vshrl.u32 %v126, 7
  %v128 = vsub.s32 2, %v127
  %v129 = vrot.slane %v15, %v128
  %v130 = vmul.f32 %v129, %v122
  %v131 = vmul.f32 %v129, %v123
  %v132 = vmul.f32 %v129, %v124
  %v133 = vmul.f32 %v129, %v125
  %v134 = vmul.f32 %v130, %v130
  %v135 = vmul.f32 %v131, %v131
  %v136 = vmul.f32 %v132, %v132
  %v137 = vmul.f32 %v133, %v133
  %v138 = vadd.f32 %v98, %v134
  %v139 = vadd.f32 %v99, %v135
  %v140 = vadd.f32 %v100, %v136
  %v141 = vadd.f32 %v101, %v137
  %142 = vset.pattern.permute.xlu0 3
  %143 = vperm.xlu0 %142, %v11
  %v144 = vpop.permute.xlu0 %143
  %146 = vset.pattern.permute.xlu0 3
  %147 = vperm.xlu0 %146, %v12
  %v148 = vpop.permute.xlu0 %147
  %150 = vset.pattern.permute.xlu0 3
  %151 = vperm.xlu0 %150, %v13
  %v152 = vpop.permute.xlu0 %151
  %154 = vset.pattern.permute.xlu0 3
  %155 = vperm.xlu0 %154, %v14
  %v156 = vpop.permute.xlu0 %155
  %v158 = vlaneseq
  %v159 = vshrl.u32 %v158, 7
  %v160 = vsub.s32 3, %v159
  %v161 = vrot.slane %v16, %v160
  %v162 = vsub.f32 %v144, %v161
  %v163 = vsub.f32 %v148, %v161
  %v164 = vsub.f32 %v152, %v161
  %v165 = vsub.f32 %v156, %v161
  %v166 = vlaneseq
  %v167 = vshrl.u32 %v166, 7
  %v168 = vsub.s32 3, %v167
  %v169 = vrot.slane %v15, %v168
  %v170 = vmul.f32 %v169, %v162
  %v171 = vmul.f32 %v169, %v163
  %v172 = vmul.f32 %v169, %v164
  %v173 = vmul.f32 %v169, %v165
  %v174 = vmul.f32 %v170, %v170
  %v175 = vmul.f32 %v171, %v171
  %v176 = vmul.f32 %v172, %v172
  %v177 = vmul.f32 %v173, %v173
  %v178 = vadd.f32 %v138, %v174
  %v179 = vadd.f32 %v139, %v175
  %v180 = vadd.f32 %v140, %v176
  %v181 = vadd.f32 %v141, %v177
  %182 = vset.pattern.permute.xlu0 4
  %183 = vperm.xlu0 %182, %v11
  %v184 = vpop.permute.xlu0 %183
  %186 = vset.pattern.permute.xlu0 4
  %187 = vperm.xlu0 %186, %v12
  %v188 = vpop.permute.xlu0 %187
  %190 = vset.pattern.permute.xlu0 4
  %191 = vperm.xlu0 %190, %v13
  %v192 = vpop.permute.xlu0 %191
  %194 = vset.pattern.permute.xlu0 4
  %195 = vperm.xlu0 %194, %v14
  %v196 = vpop.permute.xlu0 %195
  %v198 = vlaneseq
  %v199 = vshrl.u32 %v198, 7
  %v200 = vsub.s32 4, %v199
  %v201 = vrot.slane %v16, %v200
  %v202 = vsub.f32 %v184, %v201
  %v203 = vsub.f32 %v188, %v201
  %v204 = vsub.f32 %v192, %v201
  %v205 = vsub.f32 %v196, %v201
  %v206 = vlaneseq
  %v207 = vshrl.u32 %v206, 7
  %v208 = vsub.s32 4, %v207
  %v209 = vrot.slane %v15, %v208
  %v210 = vmul.f32 %v209, %v202
  %v211 = vmul.f32 %v209, %v203
  %v212 = vmul.f32 %v209, %v204
  %v213 = vmul.f32 %v209, %v205
  %v214 = vmul.f32 %v210, %v210
  %v215 = vmul.f32 %v211, %v211
  %v216 = vmul.f32 %v212, %v212
  %v217 = vmul.f32 %v213, %v213
  %v218 = vadd.f32 %v178, %v214
  %v219 = vadd.f32 %v179, %v215
  %v220 = vadd.f32 %v180, %v216
  %v221 = vadd.f32 %v181, %v217
  %222 = vset.pattern.permute.xlu0 5
  %223 = vperm.xlu0 %222, %v11
  %v224 = vpop.permute.xlu0 %223
  %226 = vset.pattern.permute.xlu0 5
  %227 = vperm.xlu0 %226, %v12
  %v228 = vpop.permute.xlu0 %227
  %230 = vset.pattern.permute.xlu0 5
  %231 = vperm.xlu0 %230, %v13
  %v232 = vpop.permute.xlu0 %231
  %234 = vset.pattern.permute.xlu0 5
  %235 = vperm.xlu0 %234, %v14
  %v236 = vpop.permute.xlu0 %235
  %v238 = vlaneseq
  %v239 = vshrl.u32 %v238, 7
  %v240 = vsub.s32 5, %v239
  %v241 = vrot.slane %v16, %v240
  %v242 = vsub.f32 %v224, %v241
  %v243 = vsub.f32 %v228, %v241
  %v244 = vsub.f32 %v232, %v241
  %v245 = vsub.f32 %v236, %v241
  %v246 = vlaneseq
  %v247 = vshrl.u32 %v246, 7
  %v248 = vsub.s32 5, %v247
  %v249 = vrot.slane %v15, %v248
  %v250 = vmul.f32 %v249, %v242
  %v251 = vmul.f32 %v249, %v243
  %v252 = vmul.f32 %v249, %v244
  %v253 = vmul.f32 %v249, %v245
  %v254 = vmul.f32 %v250, %v250
  %v255 = vmul.f32 %v251, %v251
  %v256 = vmul.f32 %v252, %v252
  %v257 = vmul.f32 %v253, %v253
  %v258 = vadd.f32 %v218, %v254
  %v259 = vadd.f32 %v219, %v255
  %v260 = vadd.f32 %v220, %v256
  %v261 = vadd.f32 %v221, %v257
  %262 = vset.pattern.permute.xlu0 6
  %263 = vperm.xlu0 %262, %v11
  %v264 = vpop.permute.xlu0 %263
  %266 = vset.pattern.permute.xlu0 6
  %267 = vperm.xlu0 %266, %v12
  %v268 = vpop.permute.xlu0 %267
  %270 = vset.pattern.permute.xlu0 6
  %271 = vperm.xlu0 %270, %v13
  %v272 = vpop.permute.xlu0 %271
  %274 = vset.pattern.permute.xlu0 6
  %275 = vperm.xlu0 %274, %v14
  %v276 = vpop.permute.xlu0 %275
  %v278 = vlaneseq
  %v279 = vshrl.u32 %v278, 7
  %v280 = vsub.s32 6, %v279
  %v281 = vrot.slane %v16, %v280
  %v282 = vsub.f32 %v264, %v281
  %v283 = vsub.f32 %v268, %v281
  %v284 = vsub.f32 %v272, %v281
  %v285 = vsub.f32 %v276, %v281
  %v286 = vlaneseq
  %v287 = vshrl.u32 %v286, 7
  %v288 = vsub.s32 6, %v287
  %v289 = vrot.slane %v15, %v288
  %v290 = vmul.f32 %v289, %v282
  %v291 = vmul.f32 %v289, %v283
  %v292 = vmul.f32 %v289, %v284
  %v293 = vmul.f32 %v289, %v285
  %v294 = vmul.f32 %v290, %v290
  %v295 = vmul.f32 %v291, %v291
  %v296 = vmul.f32 %v292, %v292
  %v297 = vmul.f32 %v293, %v293
  %v298 = vadd.f32 %v258, %v294
  %v299 = vadd.f32 %v259, %v295
  %v300 = vadd.f32 %v260, %v296
  %v301 = vadd.f32 %v261, %v297
  %302 = vset.pattern.permute.xlu0 7
  %303 = vperm.xlu0 %302, %v11
  %v304 = vpop.permute.xlu0 %303
  %306 = vset.pattern.permute.xlu0 7
  %307 = vperm.xlu0 %306, %v12
  %v308 = vpop.permute.xlu0 %307
  %310 = vset.pattern.permute.xlu0 7
  %311 = vperm.xlu0 %310, %v13
  %v312 = vpop.permute.xlu0 %311
  %314 = vset.pattern.permute.xlu0 7
  %315 = vperm.xlu0 %314, %v14
  %v316 = vpop.permute.xlu0 %315
  %v318 = vlaneseq
  %v319 = vshrl.u32 %v318, 7
  %v320 = vsub.s32 7, %v319
  %v321 = vrot.slane %v16, %v320
  %v322 = vsub.f32 %v304, %v321
  %v323 = vsub.f32 %v308, %v321
  %v324 = vsub.f32 %v312, %v321
  %v325 = vsub.f32 %v316, %v321
  %v326 = vlaneseq
  %v327 = vshrl.u32 %v326, 7
  %v328 = vsub.s32 7, %v327
  %v329 = vrot.slane %v15, %v328
  %v330 = vmul.f32 %v329, %v322
  %v331 = vmul.f32 %v329, %v323
  %v332 = vmul.f32 %v329, %v324
  %v333 = vmul.f32 %v329, %v325
  %v334 = vmul.f32 %v330, %v330
  %v335 = vmul.f32 %v331, %v331
  %v336 = vmul.f32 %v332, %v332
  %v337 = vmul.f32 %v333, %v333
  %v338 = vadd.f32 %v298, %v334
  %v339 = vadd.f32 %v299, %v335
  %v340 = vadd.f32 %v300, %v336
  %v341 = vadd.f32 %v301, %v337
  %v342 = vrsqrt.pop %v338
  %v343 = vmul.f32 %v338, %v342
  %vm344 = vcmp.eq.f32.partialorder %v338, inf
  %v345 = vsel %vm344, %v338, %v343
  %vm346 = vcmp.eq.f32.partialorder %v338, 0.0
  %v347 = vand.u32 %v338, 2147483648
  %v348 = vsel %vm346, %v347, %v345
  %v349 = vrsqrt.pop %v339
  %v350 = vmul.f32 %v339, %v349
  %vm351 = vcmp.eq.f32.partialorder %v339, inf
  %v352 = vsel %vm351, %v339, %v350
  %vm353 = vcmp.eq.f32.partialorder %v339, 0.0
  %v354 = vand.u32 %v339, 2147483648
  %v355 = vsel %vm353, %v354, %v352
  %v356 = vrsqrt.pop %v340
  %v357 = vmul.f32 %v340, %v356
  %vm358 = vcmp.eq.f32.partialorder %v340, inf
  %v359 = vsel %vm358, %v340, %v357
  %vm360 = vcmp.eq.f32.partialorder %v340, 0.0
  %v361 = vand.u32 %v340, 2147483648
  %v362 = vsel %vm360, %v361, %v359
  %v363 = vrsqrt.pop %v341
  %v364 = vmul.f32 %v341, %v363
  %vm365 = vcmp.eq.f32.partialorder %v341, inf
  %v366 = vsel %vm365, %v341, %v364
  %vm367 = vcmp.eq.f32.partialorder %v341, 0.0
  %v368 = vand.u32 %v341, 2147483648
  %v369 = vsel %vm367, %v368, %v366
  %v370 = vmul.f32 %v348, -0.5
  %v371 = vmul.f32 %v355, -0.5
  %v372 = vmul.f32 %v362, -0.5
  %v373 = vmul.f32 %v369, -0.5
  %v374 = vmul.f32 %v370, 1.442695
  %v375 = vpow.pop %v374
  %v376 = vmul.f32 %v371, 1.442695
  %v377 = vpow.pop %v376
  %v378 = vmul.f32 %v372, 1.442695
  %v379 = vpow.pop %v378
  %v380 = vmul.f32 %v373, 1.442695
  %v381 = vpow.pop %v380
  %v382 = vlaneseq
  %v383 = vshrl.u32 %v382, 7
  %v384 = vsub.s32 0, %v383
  %v385 = vrot.slane %v17, %v384
  %v386 = vmul.f32 %v375, %v385
  %v387 = vmul.f32 %v377, %v385
  %v388 = vmul.f32 %v379, %v385
  %v389 = vmul.f32 %v381, %v385
  %390 = vadd.xlane.f32.xlu0 %v386
  %v391 = vpop.xlane.xlu0 %390
  %392 = vadd.xlane.f32.xlu0 %v387
  %v393 = vpop.xlane.xlu0 %392
  %394 = vadd.xlane.f32.xlu0 %v388
  %v395 = vpop.xlane.xlu0 %394
  %396 = vadd.xlane.f32.xlu0 %v389
  %v397 = vpop.xlane.xlu0 %396
  %vm398 = vcmask 7168
  %399 = vst.msk [vmem:[%s2] sm:$0xff] %vm398, %v391
  %400 = vst.msk [vmem:[%s2 + $0x8] sm:$0xff] %vm398, %v393
  %401 = vst.msk [vmem:[%s2 + $0x10] sm:$0xff] %vm398, %v395
  %402 = vst.msk [vmem:[%s2 + $0x18] sm:$0xff] %vm398, %v397
  // Predicated region
  $region10: #{tpu_custom_call.1} parent=0 // pred_check
    _
  $region11: #{tpu_custom_call.1} parent=0 // pred_check_branch
    %404 = sbr.rel (0) target = $region13
  $region12: #{tpu_custom_call.1} parent=0 // pred_region
    _
  $region13: #{tpu_custom_call.1} parent=0 // pred_fallthru
    _
  // Predicated region
  $region14: #{tpu_custom_call.1} parent=0 // pred_check
    _
  $region15: #{tpu_custom_call.1} parent=0 // pred_check_branch
    %406 = sbr.rel (0) target = $region17
  $region16: #{tpu_custom_call.1} parent=0 // pred_region
    _
  $region17: #{tpu_custom_call.1} parent=0 // pred_fallthru
    _

</llo_original>
